<compile_context>
chip_gen: v5e
topology: v5e:2x2
jax: 0.10.0
libtpu: 0.0.40
codegen_flags: <defaults>
</compile_context>

<pallas_src>
import functools

import jax
import jax.numpy as jnp
from jax.experimental import pallas as pl
from jax.experimental.pallas import tpu as pltpu

_LANE = 128
_MIB = 1024 * 1024


def _round_up(n, m):
    return ((n + m - 1) // m) * m


def _sublane(dtype):
    # Packed dtypes pack rows along sublanes: 8 (f32) / 16 (bf16) / 32 (int8).
    return 8 * max(1, 4 // jnp.dtype(dtype).itemsize)


def _vmem_capacity_bytes():
    try:
        cap = int(pltpu.get_tpu_info().vmem_capacity_bytes)
        if cap > 0:
            return cap
    except Exception:
        pass
    return 64 * _MIB  # conservative (v7x-sized) fallback


def _ffn_kernel(x_ref, w1_ref, b1_ref, w2_ref, b2_ref, o_ref, acc_ref):
    """One (token-tile i, hidden-slab k) step of Linear -> GELU -> Linear."""
    k = pl.program_id(1)

    @pl.when(k == 0)
    def _():
        acc_ref[...] = jnp.zeros_like(acc_ref)

    # First linear slab: [TM, E] @ [E, TH] + [1, TH]  (f32 MXU accumulation).
    x = x_ref[...]
    h = jnp.dot(x, w1_ref[...], preferred_element_type=jnp.float32) + b1_ref[...]

    # GELU (tanh approximation), identical math to the PyTorch GELU module.
    # Factored argument c*h*(1 + 0.044715*h*h) saves one vmul; tanh -> EUP.
    c = jnp.float32(0.7978845608028654)  # sqrt(2/pi)
    g = (0.5 * h) * (1.0 + jnp.tanh(c * h * (1.0 + jnp.float32(0.044715) * h * h)))

    # Second linear slab: [TM, TH] @ [TH, E], accumulated across hidden slabs.
    g = g.astype(w2_ref.dtype)
    acc_ref[...] += jnp.dot(g, w2_ref[...], preferred_element_type=jnp.float32)

    @pl.when(k == pl.num_programs(1) - 1)
    def _():
        o_ref[...] = (acc_ref[...] + b2_ref[...]).astype(o_ref.dtype)


def _select_tiling(T, E_pad, H_pad, op_size, out_size, sub, tm_max, budget,
                   force_th=None):
    """Pick (TM, TH, vmem_need).  TH == H_pad => weights fully resident."""

    def weight_bytes(th, nbuf):
        return (nbuf * (E_pad * th + th * E_pad) * op_size   # w1 + w2 slabs
                + nbuf * th * 4 + E_pad * 4)                  # b1 slab + b2

    def total_bytes(tm, th, nbuf):
        acts = 2 * tm * E_pad * op_size        # x tile (double-buffered)
        outs = 2 * tm * E_pad * out_size       # out tile (double-buffered)
        acc = tm * E_pad * 4                   # f32 accumulator scratch
        inter = tm * th * (4 + op_size)        # h (f32) + g (op dtype)
        return weight_bytes(th, nbuf) + acts + outs + acc + inter

    if force_th is not None:
        th = min(_round_up(force_th, _LANE), H_pad)
        nbuf = 1 if th == H_pad else 2
    else:
        # Prefer fully-resident, single-buffered weights (constant index_maps).
        th, nbuf = H_pad, 1
        if total_bytes(sub, th, nbuf) > budget:
            # Stream the hidden dim in slabs (double-buffered while they move).
            nbuf = 2
            while th > _LANE and total_bytes(sub, th, nbuf) > budget:
                th = _round_up(th // 2, _LANE)

    tm = min(_round_up(T, sub), _round_up(tm_max, sub))
    while tm > sub and total_bytes(tm, th, nbuf) > budget:
        tm = max(sub, _round_up(tm // 2, sub))

    return tm, th, total_bytes(tm, th, nbuf)


@functools.partial(jax.jit, static_argnames=("tm_max", "mxu_dtype", "_force_th"))
def feed_forward(x, w1, b1, w2, b2, *, tm_max=1024, mxu_dtype=None,
                 _force_th=None):
    """x: [batch, seq, emb].  w1:[E,4E] b1:[4E] w2:[4E,E] b2:[E].

    Returns [batch, seq, emb], same semantics as the PyTorch FeedForward.
    Pass mxu_dtype=jnp.bfloat16 for native-MXU bf16 operands (f32 accumulation)
    on v5e/v6e/v7x when the numerics change is acceptable.
    """
    B, S, E = x.shape
    H = w1.shape[1]  # 4 * emb
    T = B * S
    out_dtype = x.dtype

    op_dtype = jnp.dtype(mxu_dtype) if mxu_dtype is not None else jnp.dtype(x.dtype)
    op_size = op_dtype.itemsize
    out_size = jnp.dtype(out_dtype).itemsize
    sub = _sublane(op_dtype)

    # Lane-dense / MXU-aligned padded feature dims.
    E_pad = _round_up(E, _LANE)
    H_pad = _round_up(H, _LANE)
    # TODO(synk): on v6e/v7x (2x256^2 MXU) round odd-multiple-of-128 dims up to
    # 256 once a cheap generation check is available (wasteful on v5e).

    capacity = _vmem_capacity_bytes()
    budget = (capacity * 3) // 4
    TM, TH, vmem_need = _select_tiling(T, E_pad, H_pad, op_size, out_size, sub,
                                       tm_max, budget, force_th=_force_th)

    # Megacore (v7x: 2 TCs): give the "parallel" token axis >=2 steps to shard
    # when the token count allows it; one extra ~0.35us step is noise elsewhere.
    if TM >= T and T > sub:
        TM = max(sub, _round_up(pl.cdiv(T, 2), sub))

    T_pad = _round_up(T, TM)
    H_pad = _round_up(H_pad, TH)          # hidden dim must tile exactly by TH
    n_h = H_pad // TH
    resident = n_h == 1

    # ---- wrapper-side layout plumbing (zero padding; sliced off at the end) --
    x2 = x.reshape(T, E)
    if x2.dtype != op_dtype:
        x2 = x2.astype(op_dtype)
    if (T_pad, E_pad) != (T, E):
        x2 = jnp.pad(x2, ((0, T_pad - T), (0, E_pad - E)))

    w1p = w1.astype(op_dtype) if w1.dtype != op_dtype else w1
    w2p = w2.astype(op_dtype) if w2.dtype != op_dtype else w2
    if (E_pad, H_pad) != (E, H):
        w1p = jnp.pad(w1p, ((0, E_pad - E), (0, H_pad - H)))
        w2p = jnp.pad(w2p, ((0, H_pad - H), (0, E_pad - E)))
    b1p = b1.astype(jnp.float32)
    b2p = b2.astype(jnp.float32)
    if H_pad != H:
        b1p = jnp.pad(b1p, (0, H_pad - H))
    if E_pad != E:
        b2p = jnp.pad(b2p, (0, E_pad - E))
    b1p = b1p.reshape(1, H_pad)
    b2p = b2p.reshape(1, E_pad)

    n_t = T_pad // TM
    grid = (n_t, n_h)

    # Resident operands (constant index_map) are single-buffered; streamed
    # weight slabs keep the default double-buffering.
    def _const(shape):
        return pl.BlockSpec(shape, lambda i, k: (0, 0),
                            pipeline_mode=pl.Buffered(1))

    if resident:
        w1_spec = _const((E_pad, TH))
        b1_spec = _const((1, TH))
        w2_spec = _const((TH, E_pad))
    else:
        w1_spec = pl.BlockSpec((E_pad, TH), lambda i, k: (0, k))
        b1_spec = pl.BlockSpec((1, TH), lambda i, k: (0, k))
        w2_spec = pl.BlockSpec((TH, E_pad), lambda i, k: (k, 0))
    b2_spec = _const((1, E_pad))

    weight_reads = 1 if resident else n_t
    cost = pl.CostEstimate(
        flops=4 * T_pad * E_pad * H_pad,           # two matmuls
        transcendentals=T_pad * H_pad,             # tanh
        bytes_accessed=int(
            x2.size * op_size
            + weight_reads * (w1p.size + w2p.size) * op_size
            + weight_reads * b1p.size * 4 + b2p.size * 4
            + T_pad * E_pad * out_size),
    )

    vmem_limit = min(capacity - 8 * _MIB,
                     max(int(vmem_need * 5 // 4), 32 * _MIB))

    out2 = pl.pallas_call(
        _ffn_kernel,
        out_shape=jax.ShapeDtypeStruct((T_pad, E_pad), out_dtype),
        grid_spec=pltpu.PrefetchScalarGridSpec(
            num_scalar_prefetch=0,
            grid=grid,
            in_specs=[
                pl.BlockSpec((TM, E_pad), lambda i, k: (i, 0)),   # activations
                w1_spec, b1_spec, w2_spec, b2_spec,
            ],
            out_specs=pl.BlockSpec((TM, E_pad), lambda i, k: (i, 0)),
            scratch_shapes=[pltpu.VMEM((TM, E_pad), jnp.float32)],
        ),
        compiler_params=pltpu.CompilerParams(
            dimension_semantics=("parallel", "arbitrary"),
            vmem_limit_bytes=vmem_limit,
        ),
        cost_estimate=cost,
    )(x2, w1p, b1p, w2p, b2p)

    if (T_pad, E_pad) != (T, E):
        out2 = out2[:T, :E]
    return out2.reshape(B, S, E)


def _reference(x, w1, b1, w2, b2):
    h = x @ w1 + b1
    c = jnp.sqrt(2.0 / jnp.pi)
    g = 0.5 * h * (1.0 + jnp.tanh(c * (h + 0.044715 * h ** 3)))
    return g @ w2 + b2


def _make_params(key, emb, hidden):
    kw1, kb1, kw2, kb2 = jax.random.split(key, 4)
    w1 = jax.random.normal(kw1, (emb, hidden), dtype=jnp.float32) * 0.02
    b1 = jax.random.normal(kb1, (hidden,), dtype=jnp.float32) * 0.02
    w2 = jax.random.normal(kw2, (hidden, emb), dtype=jnp.float32) * 0.02
    b2 = jax.random.normal(kb2, (emb,), dtype=jnp.float32) * 0.02
    return w1, b1, w2, b2


if __name__ == "__main__":
    key = jax.random.PRNGKey(0)
    k1, k2, k3, k4 = jax.random.split(key, 4)

    # Config consistent with the module: emb_dim=32, hidden = 4*32 = 128.
    batch, seq, emb = 2, 8, 32
    hidden = 4 * emb
    x = jax.random.normal(k1, (batch, seq, emb), dtype=jnp.float32)
    w1, b1, w2, b2 = _make_params(k2, emb, hidden)

    out = jax.block_until_ready(feed_forward(x, w1, b1, w2, b2))
    ref = _reference(x, w1, b1, w2, b2)
    assert out.shape == (batch, seq, emb)
    assert jnp.allclose(out, ref, atol=2e-5, rtol=2e-5)

    # Exercise the hidden-dim streaming (accumulator) path and a multi-step
    # token grid at modest size by forcing a hidden-slab width.
    batch2, seq2, emb2 = 4, 64, 128
    hidden2 = 4 * emb2
    x2 = jax.random.normal(k3, (batch2, seq2, emb2), dtype=jnp.float32)
    p2 = _make_params(k4, emb2, hidden2)

    out2 = jax.block_until_ready(feed_forward(x2, *p2, _force_th=256))
    ref2 = _reference(x2, *p2)
    assert out2.shape == (batch2, seq2, emb2)
    assert jnp.allclose(out2, ref2, atol=2e-5, rtol=2e-5)

    # bf16 MXU-operand path (f32 accumulation) with a looser tolerance.
    out3 = jax.block_until_ready(
        feed_forward(x, w1, b1, w2, b2, mxu_dtype=jnp.bfloat16))
    assert out3.shape == (batch, seq, emb)
    assert jnp.allclose(out3, ref, atol=5e-2, rtol=5e-2)

    print("KERNEL_OK")
</pallas_src>

<mosaic_0001>
module attributes {stable_mosaic.version = 11 : i64} {
  func.func @_ffn_kernel(%arg0: i32, %arg1: i32, %arg2: memref<8x128xf32, #tpu.memory_space<vmem>>, %arg3: memref<128x128xf32, #tpu.memory_space<vmem>>, %arg4: memref<1x128xf32, #tpu.memory_space<vmem>>, %arg5: memref<128x128xf32, #tpu.memory_space<vmem>>, %arg6: memref<1x128xf32, #tpu.memory_space<vmem>>, %arg7: memref<8x128xf32, #tpu.memory_space<vmem>>, %arg8: memref<8x128xf32, #tpu.memory_space<vmem>>) attributes {dimension_semantics = [#tpu.dimension_semantics<parallel>, #tpu.dimension_semantics<arbitrary>], iteration_bounds = array<i64: 2, 1>, scalar_prefetch = 0 : i64, scratch_operands = 1 : i64, tpu.core_type = #tpu.core_type<tc>, window_params = [{transform_indices = @transform_0, window_bounds = array<i64: 8, 128>}, {pipeline_mode = #tpu.pipeline_mode<synchronous>, transform_indices = @transform_1, window_bounds = array<i64: 128, 128>}, {pipeline_mode = #tpu.pipeline_mode<synchronous>, transform_indices = @transform_2, window_bounds = array<i64: 1, 128>}, {pipeline_mode = #tpu.pipeline_mode<synchronous>, transform_indices = @transform_3, window_bounds = array<i64: 128, 128>}, {pipeline_mode = #tpu.pipeline_mode<synchronous>, transform_indices = @transform_4, window_bounds = array<i64: 1, 128>}, {transform_indices = @transform_5, window_bounds = array<i64: 8, 128>}]} {
    %c0_i32 = arith.constant 0 : i32
    %0 = arith.cmpi eq, %arg1, %c0_i32 : i32
    %1 = arith.extui %0 : i1 to i32
    %c0_i32_0 = arith.constant 0 : i32
    %2 = arith.cmpi ne, %1, %c0_i32_0 : i32
    scf.if %2 {
      %cst_20 = arith.constant 0.000000e+00 : f32
      %31 = vector.broadcast %cst_20 : f32 to vector<8x128xf32>
      %c0_21 = arith.constant 0 : index
      %c0_22 = arith.constant 0 : index
      %32 = vector.load %arg8[%c0_21, %c0_22] : memref<8x128xf32, #tpu.memory_space<vmem>>, vector<8x128xf32>
      tpu.vector_store %arg8[%c0_21, %c0_22], %31 {strides = array<i32>} : memref<8x128xf32, #tpu.memory_space<vmem>>, vector<8x128xf32>,
    } else {
    }
    %c0 = arith.constant 0 : index
    %c0_1 = arith.constant 0 : index
    %3 = vector.load %arg2[%c0, %c0_1] : memref<8x128xf32, #tpu.memory_space<vmem>>, vector<8x128xf32>
    %c0_2 = arith.constant 0 : index
    %c0_3 = arith.constant 0 : index
    %4 = vector.load %arg3[%c0_2, %c0_3] : memref<128x128xf32, #tpu.memory_space<vmem>>, vector<128x128xf32>
    %cst = arith.constant dense<0.000000e+00> : vector<8x128xf32>
    %5 = tpu.matmul %3, %4, %cst {dimension_numbers = #tpu.dot_dimension_numbers<[1], [0], [0], [1], [0, 0, 1, 1], [], []>} : vector<8x128xf32>, vector<128x128xf32>, vector<8x128xf32> -> vector<8x128xf32>
    %c0_4 = arith.constant 0 : index
    %c0_5 = arith.constant 0 : index
    %6 = vector.load %arg4[%c0_4, %c0_5] : memref<1x128xf32, #tpu.memory_space<vmem>>, vector<1x128xf32>
    %7 = vector.broadcast %6 : vector<1x128xf32> to vector<8x128xf32>
    %8 = arith.addf %5, %7 : vector<8x128xf32>
    %cst_6 = arith.constant 5.000000e-01 : f32
    %9 = vector.broadcast %cst_6 : f32 to vector<8x128xf32>
    %10 = arith.mulf %9, %8 : vector<8x128xf32>
    %cst_7 = arith.constant 0.797884583 : f32
    %11 = vector.broadcast %cst_7 : f32 to vector<8x128xf32>
    %12 = arith.mulf %11, %8 : vector<8x128xf32>
    %cst_8 = arith.constant 4.471500e-02 : f32
    %13 = vector.broadcast %cst_8 : f32 to vector<8x128xf32>
    %14 = arith.mulf %13, %8 : vector<8x128xf32>
    %15 = arith.mulf %14, %8 : vector<8x128xf32>
    %cst_9 = arith.constant 1.000000e+00 : f32
    %16 = vector.broadcast %cst_9 : f32 to vector<8x128xf32>
    %17 = arith.addf %16, %15 : vector<8x128xf32>
    %18 = arith.mulf %12, %17 : vector<8x128xf32>
    %19 = math.tanh %18 : vector<8x128xf32>
    %cst_10 = arith.constant 1.000000e+00 : f32
    %20 = vector.broadcast %cst_10 : f32 to vector<8x128xf32>
    %21 = arith.addf %20, %19 : vector<8x128xf32>
    %22 = arith.mulf %10, %21 : vector<8x128xf32>
    %c0_11 = arith.constant 0 : index
    %c0_12 = arith.constant 0 : index
    %23 = vector.load %arg8[%c0_11, %c0_12] : memref<8x128xf32, #tpu.memory_space<vmem>>, vector<8x128xf32>
    %c0_13 = arith.constant 0 : index
    %c0_14 = arith.constant 0 : index
    %24 = vector.load %arg5[%c0_13, %c0_14] : memref<128x128xf32, #tpu.memory_space<vmem>>, vector<128x128xf32>
    %cst_15 = arith.constant dense<0.000000e+00> : vector<8x128xf32>
    %25 = tpu.matmul %22, %24, %cst_15 {dimension_numbers = #tpu.dot_dimension_numbers<[1], [0], [0], [1], [0, 0, 1, 1], [], []>} : vector<8x128xf32>, vector<128x128xf32>, vector<8x128xf32> -> vector<8x128xf32>
    %26 = arith.addf %23, %25 : vector<8x128xf32>
    %c0_16 = arith.constant 0 : index
    %c0_17 = arith.constant 0 : index
    %27 = vector.load %arg8[%c0_16, %c0_17] : memref<8x128xf32, #tpu.memory_space<vmem>>, vector<8x128xf32>
    tpu.vector_store %arg8[%c0_16, %c0_17], %26 {strides = array<i32>} : memref<8x128xf32, #tpu.memory_space<vmem>>, vector<8x128xf32>,
    %c0_i32_18 = arith.constant 0 : i32
    %28 = arith.cmpi eq, %arg1, %c0_i32_18 : i32
    %29 = arith.extui %28 : i1 to i32
    %c0_i32_19 = arith.constant 0 : i32
    %30 = arith.cmpi ne, %29, %c0_i32_19 : i32
    scf.if %30 {
      %c0_20 = arith.constant 0 : index
      %c0_21 = arith.constant 0 : index
      %31 = vector.load %arg8[%c0_20, %c0_21] : memref<8x128xf32, #tpu.memory_space<vmem>>, vector<8x128xf32>
      %c0_22 = arith.constant 0 : index
      %c0_23 = arith.constant 0 : index
      %32 = vector.load %arg6[%c0_22, %c0_23] : memref<1x128xf32, #tpu.memory_space<vmem>>, vector<1x128xf32>
      %33 = vector.broadcast %32 : vector<1x128xf32> to vector<8x128xf32>
      %34 = arith.addf %31, %33 : vector<8x128xf32>
      %c0_24 = arith.constant 0 : index
      %c0_25 = arith.constant 0 : index
      %35 = vector.load %arg7[%c0_24, %c0_25] : memref<8x128xf32, #tpu.memory_space<vmem>>, vector<8x128xf32>
      tpu.vector_store %arg7[%c0_24, %c0_25], %34 {strides = array<i32>} : memref<8x128xf32, #tpu.memory_space<vmem>>, vector<8x128xf32>,
    } else {
    }
    return
  }
  func.func @transform_0(%arg0: i32, %arg1: i32) -> (i32, i32) {
    %c0_i32 = arith.constant 0 : i32
    %c0_i32_0 = arith.constant 0 : i32
    return %arg0, %c0_i32 : i32, i32
  }
  func.func @transform_1(%arg0: i32, %arg1: i32) -> (i32, i32) {
    %c0_i32 = arith.constant 0 : i32
    %c0_i32_0 = arith.constant 0 : i32
    %c0_i32_1 = arith.constant 0 : i32
    return %c0_i32, %c0_i32_0 : i32, i32
  }
  func.func @transform_2(%arg0: i32, %arg1: i32) -> (i32, i32) {
    %c0_i32 = arith.constant 0 : i32
    %c0_i32_0 = arith.constant 0 : i32
    %c0_i32_1 = arith.constant 0 : i32
    return %c0_i32, %c0_i32_0 : i32, i32
  }
  func.func @transform_3(%arg0: i32, %arg1: i32) -> (i32, i32) {
    %c0_i32 = arith.constant 0 : i32
    %c0_i32_0 = arith.constant 0 : i32
    %c0_i32_1 = arith.constant 0 : i32
    return %c0_i32, %c0_i32_0 : i32, i32
  }
  func.func @transform_4(%arg0: i32, %arg1: i32) -> (i32, i32) {
    %c0_i32 = arith.constant 0 : i32
    %c0_i32_0 = arith.constant 0 : i32
    %c0_i32_1 = arith.constant 0 : i32
    return %c0_i32, %c0_i32_0 : i32, i32
  }
  func.func @transform_5(%arg0: i32, %arg1: i32) -> (i32, i32) {
    %c0_i32 = arith.constant 0 : i32
    %c0_i32_0 = arith.constant 0 : i32
    return %arg0, %c0_i32 : i32, i32
  }
}

</mosaic_0001>

<llo_original>
// kernel: feed_forward.1
$region0: #{feed_forward.1}
  #allocation0 [shape = 'u32[]', space=smem, size = 0x4, offset = 0x4, fixed_abs, tag = 'smem constant byte address 0x4 - core index']
  #allocation1 [shape = 'u32[72,128]{1,0:T(1,128)}', space=vmem, size = 0x9000, scoped, tag = 'internal scratch']
  #allocation2 [shape = 'f32[8,128]{1,0:T(8,128)}', space=vmem, size = 0x1000, scoped, tag = 'scratch operand']
  %s0 = inlined_call_operand.vmem [shape: f32[16,128], index: 0, kind: input, shape index: {}]
  %s1 = inlined_call_operand.vmem [shape: f32[128,128], index: 1, kind: input, shape index: {}]
  %s2 = inlined_call_operand.vmem [shape: f32[1,128], index: 2, kind: input, shape index: {}]
  %s3 = inlined_call_operand.vmem [shape: f32[128,128], index: 3, kind: input, shape index: {}]
  %s4 = inlined_call_operand.vmem [shape: f32[1,128], index: 4, kind: input, shape index: {}]
  %s5 = inlined_call_operand.vmem [shape: f32[16,128], index: 5, kind: output, shape index: {}]
  %s6 = sld [smem:[#allocation0]]
  $region61: #{feed_forward.1} parent=0
    _
  %s8 = ssub.s32 1, %s6
  %s9 = scalar_select 0, %s8, %s6
  loop: start=0, step=1, limit=4
  $region2: #{feed_forward.1} parent=0 // loop_pre_header
    _
  $region3: #{feed_forward.1} parent=0 // loop_header
    %s11 = sphi 0, %s15
    %p12 = scmp.ge.s32.totalorder %s11, 4
    %s18 = sphi 0, %s30
    %s19 = sphi 0, %s26
    %s20 = sphi 0, %s18
    %s21 = sphi 0, %s19
    %s22 = sphi 0, %s20
    %s23 = sphi 0, %s21
    %s33 = sphi 0, %s35
    %s36 = sphi 0, %s33
    %s37 = sphi 0, %s36
    %s53 = sphi 0, %s37
    %s57 = sphi 0, %s57
    %s59 = sphi 0, %s57
    %s60 = sphi 0, %s59
    %s74 = sphi 0, %s60
    %s78 = sphi 0, %s78
    %s80 = sphi 0, %s78
    %s81 = sphi 0, %s80
    %s95 = sphi 0, %s81
    %s99 = sphi 0, %s99
    %s101 = sphi 0, %s99
    %s102 = sphi 0, %s101
    %s116 = sphi 0, %s102
    %s120 = sphi 0, %s120
    %s122 = sphi 0, %s120
    %s123 = sphi 0, %s122
    %s137 = sphi 0, %s123
    %s143 = sphi 0, %s145
    %s146 = sphi 0, %s143
    %s147 = sphi 0, %s146
    %s163 = sphi 0, %s147
  $region4: #{feed_forward.1} parent=0 // loop_header_branch
    %14 = sbr.rel (%p12) target = $region8
  $region5: #{feed_forward.1} parent=0 // loop_body
    %s16 = ssub.s32 %s11, 1
    %s17 = ssub.s32 %s11, 2
    %s24 = sadd.s32 1, %s19
    %p25 = scmp.ge.s32.totalorder %s24, 1
    %s26 = scalar_select %p25, 0, %s24
    %s27 = sadd.s32 1, %s18
    %s28 = scalar_select %p25, %s27, %s18
    %p29 = scmp.ge.s32.totalorder %s28, 2
    %s30 = scalar_select %p29, 0, %s28
    %s31 = ssub.s32 %s18, %s30
    %p32 = scmp.eq.s32.totalorder %s31, 0
    %s34 = sadd.s32 %s33, 1
    %s35 = scalar_select %p32, %s33, %s34
    %p38 = pneg %p32
    %p39 = scmp.eq.s32.totalorder %s11, 1
    %p40 = por %p38, %p39
    %p41 = scmp.ne.s32.totalorder %s33, %s36
    %p42 = scmp.eq.s32.totalorder %s11, 0
    %p43 = por %p41, %p42
    %p44 = scmp.ne.s32.totalorder %s33, %s36
    %p45 = scmp.eq.s32.totalorder %s16, 1
    %p46 = por %p44, %p45
    %p47 = scmp.ne.s32.totalorder %s36, %s37
    %p48 = scmp.eq.s32.totalorder %s16, 0
    %p49 = por %p47, %p48
    %p50 = scmp.ne.s32.totalorder %s36, %s37
    %p51 = scmp.eq.s32.totalorder %s17, 1
    %p52 = por %p50, %p51
    %p54 = scmp.ne.s32.totalorder %s37, %s53
    %p55 = scmp.eq.s32.totalorder %s17, 0
    %p56 = por %p54, %p55
    %s58 = sadd.s32 %s57, 1
    %p61 = scmp.eq.s32.totalorder %s11, 1
    %p62 = scmp.ne.s32.totalorder %s57, %s59
    %p63 = scmp.eq.s32.totalorder %s11, 0
    %p64 = por %p62, %p63
    %p65 = scmp.ne.s32.totalorder %s57, %s59
    %p66 = scmp.eq.s32.totalorder %s16, 1
    %p67 = por %p65, %p66
    %p68 = scmp.ne.s32.totalorder %s59, %s60
    %p69 = scmp.eq.s32.totalorder %s16, 0
    %p70 = por %p68, %p69
    %p71 = scmp.ne.s32.totalorder %s59, %s60
    %p72 = scmp.eq.s32.totalorder %s17, 1
    %p73 = por %p71, %p72
    %p75 = scmp.ne.s32.totalorder %s60, %s74
    %p76 = scmp.eq.s32.totalorder %s17, 0
    %p77 = por %p75, %p76
    %s79 = sadd.s32 %s78, 1
    %p82 = scmp.eq.s32.totalorder %s11, 1
    %p83 = scmp.ne.s32.totalorder %s78, %s80
    %p84 = scmp.eq.s32.totalorder %s11, 0
    %p85 = por %p83, %p84
    %p86 = scmp.ne.s32.totalorder %s78, %s80
    %p87 = scmp.eq.s32.totalorder %s16, 1
    %p88 = por %p86, %p87
    %p89 = scmp.ne.s32.totalorder %s80, %s81
    %p90 = scmp.eq.s32.totalorder %s16, 0
    %p91 = por %p89, %p90
    %p92 = scmp.ne.s32.totalorder %s80, %s81
    %p93 = scmp.eq.s32.totalorder %s17, 1
    %p94 = por %p92, %p93
    %p96 = scmp.ne.s32.totalorder %s81, %s95
    %p97 = scmp.eq.s32.totalorder %s17, 0
    %p98 = por %p96, %p97
    %s100 = sadd.s32 %s99, 1
    %p103 = scmp.eq.s32.totalorder %s11, 1
    %p104 = scmp.ne.s32.totalorder %s99, %s101
    %p105 = scmp.eq.s32.totalorder %s11, 0
    %p106 = por %p104, %p105
    %p107 = scmp.ne.s32.totalorder %s99, %s101
    %p108 = scmp.eq.s32.totalorder %s16, 1
    %p109 = por %p107, %p108
    %p110 = scmp.ne.s32.totalorder %s101, %s102
    %p111 = scmp.eq.s32.totalorder %s16, 0
    %p112 = por %p110, %p111
    %p113 = scmp.ne.s32.totalorder %s101, %s102
    %p114 = scmp.eq.s32.totalorder %s17, 1
    %p115 = por %p113, %p114
    %p117 = scmp.ne.s32.totalorder %s102, %s116
    %p118 = scmp.eq.s32.totalorder %s17, 0
    %p119 = por %p117, %p118
    %s121 = sadd.s32 %s120, 1
    %p124 = scmp.eq.s32.totalorder %s11, 1
    %p125 = scmp.ne.s32.totalorder %s120, %s122
    %p126 = scmp.eq.s32.totalorder %s11, 0
    %p127 = por %p125, %p126
    %p128 = scmp.ne.s32.totalorder %s120, %s122
    %p129 = scmp.eq.s32.totalorder %s16, 1
    %p130 = por %p128, %p129
    %p131 = scmp.ne.s32.totalorder %s122, %s123
    %p132 = scmp.eq.s32.totalorder %s16, 0
    %p133 = por %p131, %p132
    %p134 = scmp.ne.s32.totalorder %s122, %s123
    %p135 = scmp.eq.s32.totalorder %s17, 1
    %p136 = por %p134, %p135
    %p138 = scmp.ne.s32.totalorder %s123, %s137
    %p139 = scmp.eq.s32.totalorder %s17, 0
    %p140 = por %p138, %p139
    %s141 = ssub.s32 %s18, %s30
    %p142 = scmp.eq.s32.totalorder %s141, 0
    %s144 = sadd.s32 %s143, 1
    %s145 = scalar_select %p142, %s143, %s144
    %p148 = pneg %p142
    %p149 = scmp.eq.s32.totalorder %s11, 1
    %p150 = por %p148, %p149
    %p151 = scmp.ne.s32.totalorder %s143, %s146
    %p152 = scmp.eq.s32.totalorder %s11, 0
    %p153 = por %p151, %p152
    %p154 = scmp.ne.s32.totalorder %s143, %s146
    %p155 = scmp.eq.s32.totalorder %s16, 1
    %p156 = por %p154, %p155
    %p157 = scmp.ne.s32.totalorder %s146, %s147
    %p158 = scmp.eq.s32.totalorder %s16, 0
    %p159 = por %p157, %p158
    %p160 = scmp.ne.s32.totalorder %s146, %s147
    %p161 = scmp.eq.s32.totalorder %s17, 1
    %p162 = por %p160, %p161
    %p164 = scmp.ne.s32.totalorder %s147, %s163
    %p165 = scmp.eq.s32.totalorder %s17, 0
    %p166 = por %p164, %p165
    %p167 = scmp.le.s32.totalorder 1, %s11
    %p168 = scmp.lt.s32.totalorder %s11, 3
    %p169 = pnand %p167, %p168
    %p170 = pneg %p169
    // Predicated region
    $region9: #{feed_forward.1} parent=5 // pred_check
      _
    $region10: #{feed_forward.1} parent=5 // pred_check_branch
      %172 = sbr.rel (%p169) target = $region12
    $region11: #{feed_forward.1} parent=5 // pred_region
      %s173 = ssub.s32 %s11, 1
      // Predicated region
      $region13: #{feed_forward.1} parent=11 // pred_check
        %p174 = pneg %p70
      $region14: #{feed_forward.1} parent=11 // pred_check_branch
        %176 = sbr.rel (%p174) target = $region16
      $region15: #{feed_forward.1} parent=11 // pred_region
        _
      $region16: #{feed_forward.1} parent=11 // pred_fallthru
        _
      // Predicated region
      $region17: #{feed_forward.1} parent=11 // pred_check
        %p177 = pneg %p91
      $region18: #{feed_forward.1} parent=11 // pred_check_branch
        %179 = sbr.rel (%p177) target = $region20
      $region19: #{feed_forward.1} parent=11 // pred_region
        _
      $region20: #{feed_forward.1} parent=11 // pred_fallthru
        _
      // Predicated region
      $region21: #{feed_forward.1} parent=11 // pred_check
        %p180 = pneg %p112
      $region22: #{feed_forward.1} parent=11 // pred_check_branch
        %182 = sbr.rel (%p180) target = $region24
      $region23: #{feed_forward.1} parent=11 // pred_region
        _
      $region24: #{feed_forward.1} parent=11 // pred_fallthru
        _
      // Predicated region
      $region25: #{feed_forward.1} parent=11 // pred_check
        %p183 = pneg %p133
      $region26: #{feed_forward.1} parent=11 // pred_check_branch
        %185 = sbr.rel (%p183) target = $region28
      $region27: #{feed_forward.1} parent=11 // pred_region
        _
      $region28: #{feed_forward.1} parent=11 // pred_fallthru
        _
    $region12: #{feed_forward.1} parent=5 // pred_fallthru
      _
    %p186 = scmp.lt.s32.totalorder %s11, 2
    // Predicated region
    $region29: #{feed_forward.1} parent=5 // pred_check
      %p187 = pneg %p186
    $region30: #{feed_forward.1} parent=5 // pred_check_branch
      %189 = sbr.rel (%p187) target = $region32
    $region31: #{feed_forward.1} parent=5 // pred_region
      // Predicated region
      $region33: #{feed_forward.1} parent=31 // pred_check
        %p190 = pneg %p43
      $region34: #{feed_forward.1} parent=31 // pred_check_branch
        %192 = sbr.rel (%p190) target = $region36
      $region35: #{feed_forward.1} parent=31 // pred_region
        %p193 = scmp.lt.s32.totalorder %s18, 1
        %s194 = scalar_select %p193, %s18, 1
        %s195 = smul.addr %s194, 8
        %s196 = scalar_lea.vmem %s0, %s195
      $region36: #{feed_forward.1} parent=31 // pred_fallthru
        _
    $region32: #{feed_forward.1} parent=5 // pred_fallthru
      _
    %p197 = scmp.le.s32.totalorder 1, %s11
    %p198 = scmp.lt.s32.totalorder %s11, 3
    %p199 = pnand %p197, %p198
    %p200 = pneg %p199
    // Predicated region
    $region37: #{feed_forward.1} parent=5 // pred_check
      _
    $region38: #{feed_forward.1} parent=5 // pred_check_branch
      %202 = sbr.rel (%p199) target = $region40
    $region39: #{feed_forward.1} parent=5 // pred_region
      %s203 = ssub.s32 %s11, 1
      %p204 = scmp.lt.s32.totalorder %s20, 1
      %s205 = scalar_select %p204, %s20, 1
      %s206 = smul.addr %s205, 8
      %s207 = scalar_lea.vmem %s0, %s206
      %p208 = pneg %p49
      %p209 = pneg %p46
      %p210 = pneg %p70
      %p211 = pneg %p67
      %p212 = pneg %p91
      %p213 = pneg %p88
      %p214 = pneg %p112
      %p215 = pneg %p109
      %p216 = pneg %p133
      %p217 = pneg %p130
      %p218 = pneg %p159
      %p219 = pneg %p156
      %p220 = scmp.lt.s32.totalorder %s20, 1
      %s221 = scalar_select %p220, %s20, 1
      %s222 = smul.addr %s221, 8
      %s223 = scalar_lea.vmem %s5, %s222
      %p224 = scmp.lt.s32.totalorder %s20, 1
      %s225 = scalar_select %p224, %s20, 1
      %s226 = smul.addr %s225, 8
      %s227 = scalar_lea.vmem %s0, %s226
      %p228 = scmp.lt.s32.totalorder %s20, 1
      %s229 = scalar_select %p228, %s20, 1
      %s230 = smul.addr %s229, 8
      %s231 = scalar_lea.vmem %s5, %s230
      %p232 = scmp.eq.s32.totalorder %s21, 0
      // Predicated region
      $region41: #{feed_forward.1} parent=39 // pred_check
        %p233 = pneg %p232
      $region42: #{feed_forward.1} parent=39 // pred_check_branch
        %235 = sbr.rel (%p233) target = $region44
      $region43: #{feed_forward.1} parent=39 // pred_region
        %236 = vst [vmem:[#allocation2] sm:$0xff] 0.0
      $region44: #{feed_forward.1} parent=39 // pred_fallthru
        _
      %v237 = vld [vmem:[%s227] sm:$0xff]
      %v238 = vld [vmem:[%s1] sm:$0xff]
      %v239 = vld [vmem:[%s1 + $0x8] sm:$0xff]
      %v240 = vld [vmem:[%s1 + $0x10] sm:$0xff]
      %v241 = vld [vmem:[%s1 + $0x18] sm:$0xff]
      %v242 = vld [vmem:[%s1 + $0x20] sm:$0xff]
      %v243 = vld [vmem:[%s1 + $0x28] sm:$0xff]
      %v244 = vld [vmem:[%s1 + $0x30] sm:$0xff]
      %v245 = vld [vmem:[%s1 + $0x38] sm:$0xff]
      %v246 = vld [vmem:[%s1 + $0x40] sm:$0xff]
      %v247 = vld [vmem:[%s1 + $0x48] sm:$0xff]
      %v248 = vld [vmem:[%s1 + $0x50] sm:$0xff]
      %v249 = vld [vmem:[%s1 + $0x58] sm:$0xff]
      %v250 = vld [vmem:[%s1 + $0x60] sm:$0xff]
      %v251 = vld [vmem:[%s1 + $0x68] sm:$0xff]
      %v252 = vld [vmem:[%s1 + $0x70] sm:$0xff]
      %v253 = vld [vmem:[%s1 + $0x78] sm:$0xff]
      %v254 = vld [vmem:[%s2] sm:$0x1]
      %v256 = vperm.slane %v254, 0
      %258 = vmatpush.msra.mxu0 %v253
      %259 = vmatpush.msra.mxu0 %v252
      %260 = vmatpush.msra.mxu0 %v251
      %261 = vmatpush.msra.mxu0 %v250
      %262 = vmatpush.msra.mxu0 %v249
      %263 = vmatpush.msra.mxu0 %v248
      %264 = vmatpush.msra.mxu0 %v247
      %265 = vmatpush.msra.mxu0 %v246
      %266 = vmatpush.msra.mxu0 %v245
      %267 = vmatpush.msra.mxu0 %v244
      %268 = vmatpush.msra.mxu0 %v243
      %269 = vmatpush.msra.mxu0 %v242
      %270 = vmatpush.msra.mxu0 %v241
      %271 = vmatpush.msra.mxu0 %v240
      %272 = vmatpush.msra.mxu0 %v239
      %273 = vmatpush.msra.mxu0 %v238
      %274 = vmatmul.f32.gmra.mxu0 %v237
      %v275 = vpop.f32.mrf.mxu0
      %v276 = vadd.f32 %v256, %v275
      %277 = vdwg.mxu0
      %v278 = vmul.f32 %v276, 0.5
      %v279 = vmul.f32 %v276, 0.7978846
      %v280 = vmul.f32 %v276, 0.044715
      %v281 = vmul.f32 %v280, %v276
      %v282 = vadd.f32 %v281, 1.0
      %v283 = vmul.f32 %v279, %v282
      %v284 = vtanh.pop %v283
      %v285 = vadd.f32 %v284, 1.0
      %v286 = vmul.f32 %v278, %v285
      %v287 = vld [vmem:[#allocation2] sm:$0xff]
      %v288 = vld [vmem:[%s3] sm:$0xff]
      %v289 = vld [vmem:[%s3 + $0x8] sm:$0xff]
      %v290 = vld [vmem:[%s3 + $0x10] sm:$0xff]
      %v291 = vld [vmem:[%s3 + $0x18] sm:$0xff]
      %v292 = vld [vmem:[%s3 + $0x20] sm:$0xff]
      %v293 = vld [vmem:[%s3 + $0x28] sm:$0xff]
      %v294 = vld [vmem:[%s3 + $0x30] sm:$0xff]
      %v295 = vld [vmem:[%s3 + $0x38] sm:$0xff]
      %v296 = vld [vmem:[%s3 + $0x40] sm:$0xff]
      %v297 = vld [vmem:[%s3 + $0x48] sm:$0xff]
      %v298 = vld [vmem:[%s3 + $0x50] sm:$0xff]
      %v299 = vld [vmem:[%s3 + $0x58] sm:$0xff]
      %v300 = vld [vmem:[%s3 + $0x60] sm:$0xff]
      %v301 = vld [vmem:[%s3 + $0x68] sm:$0xff]
      %v302 = vld [vmem:[%s3 + $0x70] sm:$0xff]
      %v303 = vld [vmem:[%s3 + $0x78] sm:$0xff]
      %304 = vmatpush.msra.mxu0 %v303
      %305 = vmatpush.msra.mxu0 %v302
      %306 = vmatpush.msra.mxu0 %v301
      %307 = vmatpush.msra.mxu0 %v300
      %308 = vmatpush.msra.mxu0 %v299
      %309 = vmatpush.msra.mxu0 %v298
      %310 = vmatpush.msra.mxu0 %v297
      %311 = vmatpush.msra.mxu0 %v296
      %312 = vmatpush.msra.mxu0 %v295
      %313 = vmatpush.msra.mxu0 %v294
      %314 = vmatpush.msra.mxu0 %v293
      %315 = vmatpush.msra.mxu0 %v292
      %316 = vmatpush.msra.mxu0 %v291
      %317 = vmatpush.msra.mxu0 %v290
      %318 = vmatpush.msra.mxu0 %v289
      %319 = vmatpush.msra.mxu0 %v288
      %320 = vmatmul.f32.gmra.mxu0 %v286
      %v321 = vpop.f32.mrf.mxu0
      %v322 = vadd.f32 0.0, %v321
      %323 = vdwg.mxu0
      %v324 = vadd.f32 %v287, %v322
      %325 = vst [vmem:[#allocation2] sm:$0xff] %v324
      // Predicated region
      $region45: #{feed_forward.1} parent=39 // pred_check
        %p326 = pneg %p232
      $region46: #{feed_forward.1} parent=39 // pred_check_branch
        %328 = sbr.rel (%p326) target = $region48
      $region47: #{feed_forward.1} parent=39 // pred_region
        %v329 = vld [vmem:[#allocation2] sm:$0xff]
        %v330 = vld [vmem:[%s4] sm:$0x1]
        %v332 = vperm.slane %v330, 0
        %v334 = vadd.f32 %v329, %v332
        %335 = vst [vmem:[%s231] sm:$0xff] %v334
      $region48: #{feed_forward.1} parent=39 // pred_fallthru
        _
      %p336 = scmp.lt.s32.totalorder %s20, 1
      %s337 = scalar_select %p336, %s20, 1
      %s338 = smul.addr %s337, 8
      %s339 = scalar_lea.vmem %s5, %s338
      // Predicated region
      $region49: #{feed_forward.1} parent=39 // pred_check
        %p340 = pneg %p156
      $region50: #{feed_forward.1} parent=39 // pred_check_branch
        %342 = sbr.rel (%p340) target = $region52
      $region51: #{feed_forward.1} parent=39 // pred_region
        _
      $region52: #{feed_forward.1} parent=39 // pred_fallthru
        _
    $region40: #{feed_forward.1} parent=5 // pred_fallthru
      _
    %p343 = scmp.le.s32.totalorder 2, %s11
    // Predicated region
    $region53: #{feed_forward.1} parent=5 // pred_check
      %p344 = pneg %p343
    $region54: #{feed_forward.1} parent=5 // pred_check_branch
      %346 = sbr.rel (%p344) target = $region56
    $region55: #{feed_forward.1} parent=5 // pred_region
      %s347 = ssub.s32 %s11, 2
      // Predicated region
      $region57: #{feed_forward.1} parent=55 // pred_check
        %p348 = pneg %p162
      $region58: #{feed_forward.1} parent=55 // pred_check_branch
        %350 = sbr.rel (%p348) target = $region60
      $region59: #{feed_forward.1} parent=55 // pred_region
        %p351 = scmp.lt.s32.totalorder %s22, 1
        %s352 = scalar_select %p351, %s22, 1
        %s353 = smul.addr %s352, 8
        %s354 = scalar_lea.vmem %s5, %s353
      $region60: #{feed_forward.1} parent=55 // pred_fallthru
        _
    $region56: #{feed_forward.1} parent=5 // pred_fallthru
      _
  $region6: #{feed_forward.1} parent=0 // loop_footer
    %s15 = sadd.s32 1, %s11
  $region7: #{feed_forward.1} parent=0 // loop_footer_branch
    %10 = sbr.rel target = $region3
  $region8: #{feed_forward.1} parent=0 // loop_exit
    _

</llo_original>
